<compile_context>
chip_gen: v7x
topology: tpu7x:2x2x1
jax: 0.10.0
libtpu: 0.0.40
codegen_flags: <defaults>
</compile_context>

<pallas_src>
import functools

import jax
import jax.numpy as jnp
from jax.experimental import pallas as pl
from jax.experimental.pallas import tpu as pltpu


def _round_up(x: int, m: int) -> int:
    return ((x + m - 1) // m) * m


def _noisy_ce_kernel(logits_ref, targets_ref, out_ref, *,
                     p_noisy: float, n_valid: int, tile_rows: int):
    """One batch tile: (TN, C) logits + (TN, 1) targets -> (8, 128) partial sum."""
    x = logits_ref[...].astype(jnp.float32)          # (TN, C) f32 working copy
    targets = targets_ref[...]                       # (TN, 1) int32 (garbage in tail rows)
    TN, C = x.shape

    # --- numerically stable logsumexp; target logit taken from `shifted` so the
    #     f32 cast copy dies early and row_max cancels out of the loss ---
    row_max = jnp.max(x, axis=-1, keepdims=True)                           # (TN, 1)
    shifted = x - row_max                                                  # x dead here
    col = jax.lax.broadcasted_iota(jnp.int32, (TN, C), 1)
    tgt_shifted = jnp.sum(jnp.where(col == targets, shifted, 0.0),
                          axis=-1, keepdims=True)                          # (TN, 1)
    sum_exp = jnp.sum(jnp.exp(shifted), axis=-1, keepdims=True)            # (TN, 1)
    losses = jnp.log(sum_exp) - tgt_shifted                                # (TN, 1)

    # --- noisy-label weights: one_hot(t, C).sum(1) == 1 iff 0 <= t < C ---
    oh_sum = ((targets >= 0) & (targets < C)).astype(jnp.float32)          # (TN, 1)
    weights = (1.0 - p_noisy) + p_noisy * (1.0 - oh_sum)                   # (TN, 1)

    # --- tail masking of the partial edge block via SELECT (not multiply):
    #     garbage rows may carry Inf/NaN in `losses`; where() discards them,
    #     0 * Inf would not. ---
    row = (pl.program_id(0) * tile_rows
           + jax.lax.broadcasted_iota(jnp.int32, (TN, 1), 0))
    partial = jnp.sum(jnp.where(row < n_valid, losses * weights, 0.0))     # scalar

    # Lane-dense (8, 128) block write; all elements carry this tile's partial sum.
    out_ref[...] = jnp.full(out_ref.shape, partial, dtype=jnp.float32)


def noisy_cross_entropy_loss(logits: jax.Array, targets: jax.Array,
                             p_noisy: float, *, tile_rows: int | None = None
                             ) -> jax.Array:
    """logits: (N, C) float (f32 or bf16); targets: (N,) int. Returns scalar f32."""
    N, C = logits.shape
    itemsize = jnp.dtype(logits.dtype).itemsize

    # --- generation-aware VMEM ceiling (v5e/v6e: 128 MiB, v7x: 64 MiB per TC) ---
    try:
        vmem_cap = int(getattr(pltpu.get_tpu_info(), "vmem_capacity_bytes",
                               64 << 20))
    except Exception:
        vmem_cap = 64 << 20                      # conservative fallback (v7x-sized)
    vmem_ceiling = (vmem_cap * 3) // 4

    # --- tile sizing by bytes: double-buffered wire tile + ~4 full-tile f32
    #     temporaries + double-buffered lane-padded (tn, 1) targets block ---
    live_per_row = 2 * C * itemsize + 4 * C * 4 + 2 * 128 * 4
    budget = min(24 << 20, max(8 << 20, vmem_ceiling - (8 << 20)))
    if tile_rows is None:
        tn = budget // live_per_row
    else:
        tn = int(tile_rows)
    tn = max(8, min(8192, (tn // 8) * 8))
    if N <= tn:
        tn = _round_up(N, 8)

    num_tiles = pl.cdiv(N, tn)                   # no padding of logits: edge block is partial
    targets_2d = targets.astype(jnp.int32).reshape(N, 1)

    kernel = functools.partial(_noisy_ce_kernel, p_noisy=float(p_noisy),
                               n_valid=N, tile_rows=tn)

    # Explicit VMEM budget: wire tiles (x2 buffers) + in-kernel f32 temporaries
    # + targets buffers + slack; clamped to the generation ceiling.
    needed = (2 * tn * C * itemsize + 4 * tn * C * 4
              + 2 * tn * 128 * 4 + (2 << 20))
    vmem_limit = int(min(max(needed, 16 << 20), vmem_ceiling))

    cost = pl.CostEstimate(
        flops=int(6 * N * C),
        transcendentals=int(N * C),
        bytes_accessed=int(N * C * itemsize + N * 4 + num_tiles * 8 * 128 * 4),
    )

    partials = pl.pallas_call(
        kernel,
        out_shape=jax.ShapeDtypeStruct((num_tiles * 8, 128), jnp.float32),
        grid=(num_tiles,),
        in_specs=[
            pl.BlockSpec((tn, C), lambda i: (i, 0)),   # logits tile (lane-dense)
            pl.BlockSpec((tn, 1), lambda i: (i, 0)),   # targets column (lane-padded, tiny)
        ],
        out_specs=pl.BlockSpec((8, 128), lambda i: (i, 0)),
        compiler_params=pltpu.CompilerParams(
            dimension_semantics=("parallel",),          # shards across TCs on v7x
            vmem_limit_bytes=vmem_limit,
        ),
        cost_estimate=cost,
    )(logits, targets_2d)

    # Tiny final reduction + mean outside the kernel (free in XLA; keeps the grid
    # axis parallel instead of serializing into a single scalar accumulator).
    return jnp.sum(partials[::8, 0]) / jnp.float32(N)


def _reference(logits, targets, p_noisy):
    logits = logits.astype(jnp.float32)
    N, C = logits.shape
    lse = jax.scipy.special.logsumexp(logits, axis=-1)
    tgt = jnp.take_along_axis(logits, targets.reshape(N, 1).astype(jnp.int32),
                              axis=-1)[:, 0]
    losses = lse - tgt
    one_hot = jax.nn.one_hot(targets, C, dtype=jnp.float32)
    weights = 1.0 - p_noisy + p_noisy * (1.0 - one_hot.sum(axis=1))
    return jnp.mean(losses * weights)


if __name__ == "__main__":
    p_noisy = 0.2

    # 1) small batch, single-tile path, f32
    k1, k2 = jax.random.split(jax.random.PRNGKey(0))
    logits = jax.random.normal(k1, (8, 32), dtype=jnp.float32)
    targets = jax.random.randint(k2, (8,), 0, 32, dtype=jnp.int32)
    out = jax.block_until_ready(noisy_cross_entropy_loss(logits, targets, p_noisy))
    ref = jax.block_until_ready(_reference(logits, targets, p_noisy))
    assert jnp.allclose(out, ref, rtol=1e-5, atol=1e-5), (out, ref)

    # 2) multi-tile grid + pad-free partial edge block (N=20, tile_rows=8 -> 3 tiles)
    k1, k2 = jax.random.split(jax.random.PRNGKey(1))
    logits = jax.random.normal(k1, (20, 32), dtype=jnp.float32)
    targets = jax.random.randint(k2, (20,), 0, 32, dtype=jnp.int32)
    out = jax.block_until_ready(
        noisy_cross_entropy_loss(logits, targets, p_noisy, tile_rows=8))
    ref = jax.block_until_ready(_reference(logits, targets, p_noisy))
    assert jnp.allclose(out, ref, rtol=1e-5, atol=1e-5), (out, ref)

    # 3) bf16 logits stay bf16 on the HBM->VMEM wire; f32 math inside the kernel
    k1, k2 = jax.random.split(jax.random.PRNGKey(2))
    logits = jax.random.normal(k1, (16, 32), dtype=jnp.bfloat16)
    targets = jax.random.randint(k2, (16,), 0, 32, dtype=jnp.int32)
    out = jax.block_until_ready(noisy_cross_entropy_loss(logits, targets, p_noisy))
    ref = jax.block_until_ready(_reference(logits, targets, p_noisy))
    assert jnp.allclose(out, ref, rtol=1e-4, atol=1e-4), (out, ref)

    # 4) N not a multiple of 8, default tiling: single partial block, no pad copy
    k1, k2 = jax.random.split(jax.random.PRNGKey(3))
    logits = jax.random.normal(k1, (13, 32), dtype=jnp.float32)
    targets = jax.random.randint(k2, (13,), 0, 32, dtype=jnp.int32)
    out = jax.block_until_ready(noisy_cross_entropy_loss(logits, targets, p_noisy))
    ref = jax.block_until_ready(_reference(logits, targets, p_noisy))
    assert jnp.allclose(out, ref, rtol=1e-5, atol=1e-5), (out, ref)

    print("KERNEL_OK")
</pallas_src>

<mosaic_0001>
module attributes {stable_mosaic.version = 11 : i64} {
  func.func @_noisy_ce_kernel(%arg0: i32, %arg1: memref<8x32xf32, #tpu.memory_space<vmem>>, %arg2: memref<8x1xi32, #tpu.memory_space<vmem>>, %arg3: memref<8x128xf32, #tpu.memory_space<vmem>>) attributes {dimension_semantics = [#tpu.dimension_semantics<parallel>], iteration_bounds = array<i64: 1>, scalar_prefetch = 0 : i64, scratch_operands = 0 : i64, tpu.core_type = #tpu.core_type<tc>, window_params = [{transform_indices = @transform_0, window_bounds = array<i64: 8, 32>}, {transform_indices = @transform_1, window_bounds = array<i64: 8, 1>}, {transform_indices = @transform_2, window_bounds = array<i64: 8, 128>}]} {
    %c0 = arith.constant 0 : index
    %c0_0 = arith.constant 0 : index
    %0 = vector.load %arg1[%c0, %c0_0] : memref<8x32xf32, #tpu.memory_space<vmem>>, vector<8x32xf32>
    %c0_1 = arith.constant 0 : index
    %c0_2 = arith.constant 0 : index
    %1 = vector.load %arg2[%c0_1, %c0_2] : memref<8x1xi32, #tpu.memory_space<vmem>>, vector<8x1xi32>
    %cst = arith.constant dense<0xFF800000> : vector<8xf32>
    %2 = vector.multi_reduction <maximumf>, %0, %cst [1] : vector<8x32xf32> to vector<8xf32>
    %3 = vector.shape_cast %2 : vector<8xf32> to vector<8x1xf32>
    %4 = vector.broadcast %3 : vector<8x1xf32> to vector<8x32xf32>
    %5 = arith.subf %0, %4 : vector<8x32xf32>
    %6 = tpu.iota {dimensions = array<i32: 1>} : vector<8x32xi32>
    %7 = vector.broadcast %1 : vector<8x1xi32> to vector<8x32xi32>
    %8 = arith.cmpi eq, %6, %7 : vector<8x32xi32>
    %cst_3 = arith.constant 0.000000e+00 : f32
    %9 = vector.broadcast %cst_3 : f32 to vector<8x32xf32>
    %10 = arith.select %8, %5, %9 : vector<8x32xi1>, vector<8x32xf32>
    %cst_4 = arith.constant dense<0.000000e+00> : vector<8xf32>
    %11 = vector.multi_reduction <add>, %10, %cst_4 [1] : vector<8x32xf32> to vector<8xf32>
    %12 = vector.shape_cast %11 : vector<8xf32> to vector<8x1xf32>
    %13 = math.exp %5 : vector<8x32xf32>
    %cst_5 = arith.constant dense<0.000000e+00> : vector<8xf32>
    %14 = vector.multi_reduction <add>, %13, %cst_5 [1] : vector<8x32xf32> to vector<8xf32>
    %15 = vector.shape_cast %14 : vector<8xf32> to vector<8x1xf32>
    %16 = math.log %15 : vector<8x1xf32>
    %17 = arith.subf %16, %12 : vector<8x1xf32>
    %c0_i32 = arith.constant 0 : i32
    %18 = vector.broadcast %c0_i32 : i32 to vector<8x1xi32>
    %19 = arith.cmpi sge, %1, %18 : vector<8x1xi32>
    %c32_i32 = arith.constant 32 : i32
    %20 = vector.broadcast %c32_i32 : i32 to vector<8x1xi32>
    %21 = arith.cmpi slt, %1, %20 : vector<8x1xi32>
    %22 = arith.andi %19, %21 : vector<8x1xi1>
    %23 = arith.extui %22 : vector<8x1xi1> to vector<8x1xi32>
    %24 = arith.sitofp %23 : vector<8x1xi32> to vector<8x1xf32>
    %cst_6 = arith.constant 1.000000e+00 : f32
    %25 = vector.broadcast %cst_6 : f32 to vector<8x1xf32>
    %26 = arith.subf %25, %24 : vector<8x1xf32>
    %cst_7 = arith.constant 2.000000e-01 : f32
    %27 = vector.broadcast %cst_7 : f32 to vector<8x1xf32>
    %28 = arith.mulf %27, %26 : vector<8x1xf32>
    %cst_8 = arith.constant 8.000000e-01 : f32
    %29 = vector.broadcast %cst_8 : f32 to vector<8x1xf32>
    %30 = arith.addf %29, %28 : vector<8x1xf32>
    %c8_i32 = arith.constant 8 : i32
    %31 = arith.muli %arg0, %c8_i32 : i32
    %32 = tpu.iota {dimensions = array<i32: 0>} : vector<8x1xi32>
    %33 = vector.broadcast %31 : i32 to vector<8x1xi32>
    %34 = arith.addi %33, %32 : vector<8x1xi32>
    %c8_i32_9 = arith.constant 8 : i32
    %35 = vector.broadcast %c8_i32_9 : i32 to vector<8x1xi32>
    %36 = arith.cmpi slt, %34, %35 : vector<8x1xi32>
    %37 = arith.mulf %17, %30 : vector<8x1xf32>
    %cst_10 = arith.constant 0.000000e+00 : f32
    %38 = vector.broadcast %cst_10 : f32 to vector<8x1xf32>
    %39 = arith.select %36, %37, %38 : vector<8x1xi1>, vector<8x1xf32>
    %40 = vector.shape_cast %39 : vector<8x1xf32> to vector<1x8x1xf32>
    %cst_11 = arith.constant dense<0.000000e+00> : vector<1xf32>
    %41 = vector.multi_reduction <add>, %40, %cst_11 [1, 2] : vector<1x8x1xf32> to vector<1xf32>
    %42 = vector.shape_cast %41 : vector<1xf32> to vector<1x1x1xf32>
    %43 = vector.extract %42[0, 0, 0] : f32 from vector<1x1x1xf32>
    %44 = vector.broadcast %43 : f32 to vector<8x128xf32>
    %c0_12 = arith.constant 0 : index
    %c0_13 = arith.constant 0 : index
    %45 = vector.load %arg3[%c0_12, %c0_13] : memref<8x128xf32, #tpu.memory_space<vmem>>, vector<8x128xf32>
    tpu.vector_store %arg3[%c0_12, %c0_13], %44 {strides = array<i32>} : memref<8x128xf32, #tpu.memory_space<vmem>>, vector<8x128xf32>,
    return
  }
  func.func @transform_0(%arg0: i32) -> (i32, i32) {
    %c0_i32 = arith.constant 0 : i32
    %c0_i32_0 = arith.constant 0 : i32
    return %arg0, %c0_i32 : i32, i32
  }
  func.func @transform_1(%arg0: i32) -> (i32, i32) {
    %c0_i32 = arith.constant 0 : i32
    %c0_i32_0 = arith.constant 0 : i32
    return %arg0, %c0_i32 : i32, i32
  }
  func.func @transform_2(%arg0: i32) -> (i32, i32) {
    %c0_i32 = arith.constant 0 : i32
    %c0_i32_0 = arith.constant 0 : i32
    return %arg0, %c0_i32 : i32, i32
  }
}

</mosaic_0001>

<llo_original>
// kernel: tpu_custom_call.1
$region0: #{tpu_custom_call.1}
  #allocation0 [shape = 'u32[]', space=smem, size = 0x4, offset = 0x4, fixed_abs, tag = 'smem constant byte address 0x4 - core index']
  #allocation1 [shape = 'u32[144,128]{1,0:T(1,128)}', space=vmem, size = 0x12000, scoped, tag = 'internal scratch']
  %s0 = inlined_call_operand.vmem [shape: f32[8,32], index: 0, kind: input, shape index: {}]
  %s1 = inlined_call_operand.vmem [shape: s32[8,1], index: 1, kind: input, shape index: {}]
  %s2 = inlined_call_operand.hbm [shape: f32[8,128], index: 2, kind: output, shape index: {}]
  %s3 = sld [smem:[#allocation0]]
  $region18: #{tpu_custom_call.1} parent=0
    _
  %s5 = ssub.s32 1, %s3
  %s6 = scalar_select 0, %s5, %s3
  $region1: #{tpu_custom_call.1} parent=0
    #allocation2 [shape = 'u8[4096]{0}', space=vmem, size = 0x1000, scoped, tag = 'output window, operand 0, single buffered']
    #allocation3 [shape = 's32[1]{0}', space=sflag, size = 0x4, scoped, tag = 'scoped memory for tpu_custom_call.1']
    %7 = vsyncpa [#allocation3], 0
    // Predicated region
    $region2: #{tpu_custom_call.1} parent=1 // pred_check
      _
    $region3: #{tpu_custom_call.1} parent=1 // pred_check_branch
      %9 = sbr.rel (0) target = $region5
    $region4: #{tpu_custom_call.1} parent=1 // pred_region
      _
    $region5: #{tpu_custom_call.1} parent=1 // pred_fallthru
      _
    // Predicated region
    $region6: #{tpu_custom_call.1} parent=1 // pred_check
      _
    $region7: #{tpu_custom_call.1} parent=1 // pred_check_branch
      %11 = sbr.rel (0) target = $region9
    $region8: #{tpu_custom_call.1} parent=1 // pred_region
      _
    $region9: #{tpu_custom_call.1} parent=1 // pred_fallthru
      _
    %v12 = vld [vmem:[%s0] sm:$0xff]
    %v13 = vld [vmem:[%s1] sm:$0xff]
    %vm14 = vcmask 261120
    %v15 = vsel %vm14, %v12, -inf
    %16 = vmax.xlane.f32.xlu0 %v15
    %v17 = vpop.xlane.xlu0 %16
    %v18 = vsub.f32 %v12, %v17
    %v19 = vlaneseq
    %v20 = vand.u32 %v19, 127
    %21 = vset.pattern.permute.xlu0 0
    %22 = vperm.xlu0 %21, %v13
    %v23 = vpop.permute.xlu0 %22
    %vm24 = vcmp.eq.s32.totalorder %v20, %v23
    %v25 = vsel %vm24, %v18, 0.0
    %v26 = vsel %vm14, %v25, 0.0
    %27 = vadd.xlane.f32.xlu0 %v26
    %v28 = vpop.xlane.xlu0 %27
    %v29 = vmul.f32 %v18, 1.442695
    %v30 = vpow.pop %v29
    %v31 = vsel %vm14, %v30, 0.0
    %32 = vadd.xlane.f32.xlu0 %v31
    %v33 = vpop.xlane.xlu0 %32
    %v34 = vlog2.pop %v33
    %v35 = vmul.f32 %v34, 0.6931472
    %v36 = vsub.f32 %v35, %v28
    %vm37 = vcmp.ge.s32.totalorder %v13, 0
    %vm38 = vcmp.lt.s32.totalorder %v13, 32
    %vm39 = vmand %vm37, %vm38
    %v40 = vsel %vm39, 1, 0
    %v41 = vcvt.s32.f32 %v40
    %v42 = vsub.f32 1.0, %v41
    %v43 = vmul.f32 %v42, 0.2
    %v44 = vadd.f32 %v43, 0.8
    %s45 = smul.u32 0, 8
    %v46 = vlaneseq
    %v47 = vshrl.u32 %v46, 7
    %v48 = vstv %s45
    %v49 = vadd.s32 %v48, %v47
    %vm50 = vcmp.lt.s32.totalorder %v49, 8
    %v51 = vmul.f32 %v36, %v44
    %v52 = vsel %vm50, %v51, 0.0
    %vm53 = vcmask 7168
    %v54 = vsel %vm53, %v52, 0.0
    %55 = vadd.xlane.f32.xlu0 %v54
    %v56 = vpop.xlane.xlu0 %55
    %v57 = vrot.slane %v56, 4
    %v58 = vadd.f32 %v56, %v57
    %v59 = vrot.slane %v58, 2
    %v60 = vadd.f32 %v58, %v59
    %v61 = vrot.slane %v60, 1
    %v62 = vadd.f32 %v60, %v61
    %s63 = vtos %v62
    %v64 = vstv %s63
    %65 = vst [vmem:[#allocation2] sm:$0xff] %v64
    // Predicated region
    $region10: #{tpu_custom_call.1} parent=1 // pred_check
      _
    $region11: #{tpu_custom_call.1} parent=1 // pred_check_branch
      %67 = sbr.rel (0) target = $region13
    $region12: #{tpu_custom_call.1} parent=1 // pred_region
      %s69 = ssub.s32 128, 128
      %70 = vsyncadd [#allocation3], %s69
      %s72 = sshll.u32 [#allocation2], 4
      %s73 = int_to_ptr.vmem [resolvable:$true] %s72
      %75 = dma.vmem_to_hbm [thread:$0]  %s73, 128, %s2, [#allocation3]
    $region13: #{tpu_custom_call.1} parent=1 // pred_fallthru
      _
    // Predicated region
    $region14: #{tpu_custom_call.1} parent=1 // pred_check
      _
    $region15: #{tpu_custom_call.1} parent=1 // pred_check_branch
      %77 = sbr.rel (0) target = $region17
    $region16: #{tpu_custom_call.1} parent=1 // pred_region
      %78 = dma.done [#allocation3], 128
    $region17: #{tpu_custom_call.1} parent=1 // pred_fallthru
      _
    %79 = vsyncpa [#allocation3], 1

</llo_original>
